<compile_context>
chip_gen: v7x
topology: tpu7x:2x2x1
jax: 0.10.0
libtpu: 0.0.40
codegen_flags: <defaults>
</compile_context>

<pallas_src>
import math

import jax
import jax.numpy as jnp
from jax.experimental import pallas as pl
from jax.experimental.pallas import tpu as pltpu

_LANE = 128
_SUBLANE = 8
_TARGET_BLOCK_BYTES = 2 * 1024 * 1024   # ~2 MiB output block per grid step


def _round_up(a, b):
    return (a + b - 1) // b * b


def _pe_kernel(x_ref, div_ref, phase_ref, o_ref):
    # o = sin(x * div + phase); phase is 0 on "sin" lanes, pi/2 on "cos"
    # lanes, so one EUP transcendental covers both parities.
    o_ref[...] = jnp.sin(x_ref[...] * div_ref[...] + phase_ref[...])


def arbitrary_position_encoder(x, input_dim):
    """x: (N,) float positions -> (N, input_dim) float32 positional encoding."""
    if input_dim % 2 != 0:
        raise ValueError("input_dim must be even (matches the PyTorch module).")
    x = jnp.asarray(x, jnp.float32).reshape(-1)
    n = int(x.shape[0])
    d = int(input_dim)

    # div_term as in the PyTorch module, interleaved to full width D, plus the
    # phase row (0 on even cols, pi/2 on odd cols).
    half = jnp.arange(0, d, 2, dtype=jnp.float32)
    div_term = jnp.exp(half * -(math.log(10000.0) / d))              # (D//2,)
    div_full = jnp.repeat(div_term, 2)                                # (D,)
    phase_full = jnp.tile(jnp.array([0.0, math.pi / 2.0], jnp.float32), d // 2)

    pack = (d < _LANE) and (_LANE % d == 0)
    if pack:
        # Lane-dense packing: view the (N, D) output as (N/G, 128) with
        # G = 128 // D original rows per packed row.  div/phase are tiled
        # across the lane axis; each x value is expanded to cover its D lanes.
        g = _LANE // d
        n_pack = _round_up(n, g) // g
        x_pad = jnp.pad(x, (0, n_pack * g - n))
        x_rows = jnp.repeat(x_pad.reshape(n_pack, g), d, axis=1)      # (n_pack, 128)
        div_row = jnp.tile(div_full, g).reshape(1, _LANE)
        phase_row = jnp.tile(phase_full, g).reshape(1, _LANE)
        rows, width = n_pack, _LANE
    else:
        x_rows = x.reshape(n, 1)
        div_row = div_full.reshape(1, d)
        phase_row = phase_full.reshape(1, d)
        rows, width = n, d

    # Row tile: multiple of 8 (sublane rule), sized so one output block is
    # ~2 MiB -> double-buffered inputs+outputs stay well under v7x's VMEM.
    tile_n = max(_SUBLANE, _TARGET_BLOCK_BYTES // (width * 4))
    tile_n = min(tile_n, _round_up(rows, _SUBLANE))
    tile_n = max(_SUBLANE, (tile_n // _SUBLANE) * _SUBLANE)
    rows_padded = _round_up(rows, tile_n)
    if rows_padded != rows:
        x_rows = jnp.pad(x_rows, ((0, rows_padded - rows), (0, 0)))

    grid = (rows_padded // tile_n,)
    x_width = x_rows.shape[1]

    out = pl.pallas_call(
        _pe_kernel,
        out_shape=jax.ShapeDtypeStruct((rows_padded, width), jnp.float32),
        grid_spec=pltpu.PrefetchScalarGridSpec(
            num_scalar_prefetch=0,
            grid=grid,
            in_specs=[
                pl.BlockSpec((tile_n, x_width), lambda i: (i, 0)),
                pl.BlockSpec((1, width), lambda i: (0, 0)),   # resident row
                pl.BlockSpec((1, width), lambda i: (0, 0)),   # resident row
            ],
            out_specs=pl.BlockSpec((tile_n, width), lambda i: (i, 0)),
        ),
        compiler_params=pltpu.CompilerParams(
            dimension_semantics=("parallel",),      # shard row tiles across TCs (v7x)
            vmem_limit_bytes=32 * 1024 * 1024,
        ),
    )(x_rows, div_row, phase_row)

    if pack:
        out = out.reshape(rows_padded * (_LANE // d), d)
    return out[:n]


def _reference(x, input_dim):
    x = jnp.asarray(x, jnp.float32)
    half = jnp.arange(0, input_dim, 2, dtype=jnp.float32)
    div_term = jnp.exp(half * -(math.log(10000.0) / input_dim))
    pe = jnp.zeros((x.shape[0], input_dim), jnp.float32)
    pe = pe.at[:, 0::2].set(jnp.sin(x[:, None] * div_term[None, :]))
    pe = pe.at[:, 1::2].set(jnp.cos(x[:, None] * div_term[None, :]))
    return pe


if __name__ == "__main__":
    key = jax.random.PRNGKey(0)

    # Small shape implied by the module: 8 arbitrary positions, hidden=32.
    N, INPUT_DIM = 8, 32
    x = jax.random.uniform(key, (N,), jnp.float32, minval=0.0, maxval=100.0)
    out = jax.block_until_ready(arbitrary_position_encoder(x, INPUT_DIM))
    ref = _reference(x, INPUT_DIM)
    assert out.shape == (N, INPUT_DIM) and out.dtype == jnp.float32
    # atol slightly above 1e-5: sin(a + pi/2) differs from cos(a) by a few ULPs
    # of the summed angle for |a| ~ 100.
    assert jnp.allclose(out, ref, atol=5e-5, rtol=1e-5), "mismatch (packed path)"

    # Also exercise the non-packed (D >= 128) path with a ragged row count.
    N2, D2 = 37, 256
    x2 = jax.random.uniform(jax.random.PRNGKey(1), (N2,), jnp.float32,
                            minval=0.0, maxval=50.0)
    out2 = jax.block_until_ready(arbitrary_position_encoder(x2, D2))
    ref2 = _reference(x2, D2)
    assert out2.shape == (N2, D2)
    assert jnp.allclose(out2, ref2, atol=5e-5, rtol=1e-5), "mismatch (wide path)"

    print("KERNEL_OK")
</pallas_src>

<mosaic_0001>
module attributes {stable_mosaic.version = 11 : i64} {
  func.func @_pe_kernel(%arg0: i32, %arg1: memref<8x128xf32, #tpu.memory_space<vmem>>, %arg2: memref<1x128xf32, #tpu.memory_space<vmem>>, %arg3: memref<1x128xf32, #tpu.memory_space<vmem>>, %arg4: memref<8x128xf32, #tpu.memory_space<vmem>>) attributes {dimension_semantics = [#tpu.dimension_semantics<parallel>], iteration_bounds = array<i64: 1>, scalar_prefetch = 0 : i64, scratch_operands = 0 : i64, tpu.core_type = #tpu.core_type<tc>, window_params = [{transform_indices = @transform_0, window_bounds = array<i64: 8, 128>}, {pipeline_mode = #tpu.pipeline_mode<synchronous>, transform_indices = @transform_1, window_bounds = array<i64: 1, 128>}, {pipeline_mode = #tpu.pipeline_mode<synchronous>, transform_indices = @transform_2, window_bounds = array<i64: 1, 128>}, {transform_indices = @transform_3, window_bounds = array<i64: 8, 128>}]} {
    %c0 = arith.constant 0 : index
    %c0_0 = arith.constant 0 : index
    %0 = vector.load %arg1[%c0, %c0_0] : memref<8x128xf32, #tpu.memory_space<vmem>>, vector<8x128xf32>
    %c0_1 = arith.constant 0 : index
    %c0_2 = arith.constant 0 : index
    %1 = vector.load %arg2[%c0_1, %c0_2] : memref<1x128xf32, #tpu.memory_space<vmem>>, vector<1x128xf32>
    %2 = vector.broadcast %1 : vector<1x128xf32> to vector<8x128xf32>
    %3 = arith.mulf %0, %2 : vector<8x128xf32>
    %c0_3 = arith.constant 0 : index
    %c0_4 = arith.constant 0 : index
    %4 = vector.load %arg3[%c0_3, %c0_4] : memref<1x128xf32, #tpu.memory_space<vmem>>, vector<1x128xf32>
    %5 = vector.broadcast %4 : vector<1x128xf32> to vector<8x128xf32>
    %6 = arith.addf %3, %5 : vector<8x128xf32>
    %7 = math.sin %6 : vector<8x128xf32>
    %c0_5 = arith.constant 0 : index
    %c0_6 = arith.constant 0 : index
    %8 = vector.load %arg4[%c0_5, %c0_6] : memref<8x128xf32, #tpu.memory_space<vmem>>, vector<8x128xf32>
    tpu.vector_store %arg4[%c0_5, %c0_6], %7 {strides = array<i32>} : memref<8x128xf32, #tpu.memory_space<vmem>>, vector<8x128xf32>,
    return
  }
  func.func @transform_0(%arg0: i32) -> (i32, i32) {
    %c0_i32 = arith.constant 0 : i32
    %c0_i32_0 = arith.constant 0 : i32
    return %arg0, %c0_i32 : i32, i32
  }
  func.func @transform_1(%arg0: i32) -> (i32, i32) {
    %c0_i32 = arith.constant 0 : i32
    %c0_i32_0 = arith.constant 0 : i32
    %c0_i32_1 = arith.constant 0 : i32
    return %c0_i32, %c0_i32_0 : i32, i32
  }
  func.func @transform_2(%arg0: i32) -> (i32, i32) {
    %c0_i32 = arith.constant 0 : i32
    %c0_i32_0 = arith.constant 0 : i32
    %c0_i32_1 = arith.constant 0 : i32
    return %c0_i32, %c0_i32_0 : i32, i32
  }
  func.func @transform_3(%arg0: i32) -> (i32, i32) {
    %c0_i32 = arith.constant 0 : i32
    %c0_i32_0 = arith.constant 0 : i32
    return %arg0, %c0_i32 : i32, i32
  }
}

</mosaic_0001>

<llo_original>
// kernel: tpu_custom_call.1
$region0: #{tpu_custom_call.1}
  #allocation0 [shape = 'u32[]', space=smem, size = 0x4, offset = 0x4, fixed_abs, tag = 'smem constant byte address 0x4 - core index']
  #allocation1 [shape = 'u32[144,128]{1,0:T(1,128)}', space=vmem, size = 0x12000, scoped, tag = 'internal scratch']
  %s0 = inlined_call_operand.hbm [shape: f32[8,128], index: 0, kind: input, shape index: {}]
  %s1 = inlined_call_operand.vmem [shape: f32[1,128], index: 1, kind: input, shape index: {}]
  %s2 = inlined_call_operand.vmem [shape: f32[1,128], index: 2, kind: input, shape index: {}]
  %s3 = inlined_call_operand.hbm [shape: f32[8,128], index: 3, kind: output, shape index: {}]
  %s4 = sld [smem:[#allocation0]]
  $region26: #{tpu_custom_call.1} parent=0
    _
  %s6 = ssub.s32 1, %s4
  %s7 = scalar_select 0, %s6, %s4
  $region1: #{tpu_custom_call.1} parent=0
    #allocation2 [shape = 'u8[4096]{0}', space=vmem, size = 0x1000, scoped, tag = 'input window, operand 0, single buffered']
    #allocation3 [shape = 's32[1]{0}', space=sflag, size = 0x4, scoped, tag = 'scoped memory for tpu_custom_call.1']
    #allocation4 [shape = 's32[1]{0}', space=sflag, size = 0x4, scoped, tag = 'scoped memory for tpu_custom_call.1']
    #allocation5 [shape = 'u8[4096]{0}', space=vmem, size = 0x1000, scoped, tag = 'output window, operand 0, single buffered']
    %8 = vsyncpa [#allocation3], 0
    %9 = vsyncpa [#allocation4], 0
    // Predicated region
    $region2: #{tpu_custom_call.1} parent=1 // pred_check
      _
    $region3: #{tpu_custom_call.1} parent=1 // pred_check_branch
      %11 = sbr.rel (0) target = $region5
    $region4: #{tpu_custom_call.1} parent=1 // pred_region
      %s13 = ssub.s32 128, 128
      %14 = vsyncadd [#allocation3], %s13
      %s16 = sshll.u32 [#allocation2], 4
      %s17 = int_to_ptr.vmem [resolvable:$true] %s16
      %19 = dma.hbm_to_vmem [thread:$0]  %s0, 128, %s17, [#allocation3]
    $region5: #{tpu_custom_call.1} parent=1 // pred_fallthru
      _
    // Predicated region
    $region6: #{tpu_custom_call.1} parent=1 // pred_check
      _
    $region7: #{tpu_custom_call.1} parent=1 // pred_check_branch
      %21 = sbr.rel (0) target = $region9
    $region8: #{tpu_custom_call.1} parent=1 // pred_region
      _
    $region9: #{tpu_custom_call.1} parent=1 // pred_fallthru
      _
    // Predicated region
    $region10: #{tpu_custom_call.1} parent=1 // pred_check
      _
    $region11: #{tpu_custom_call.1} parent=1 // pred_check_branch
      %23 = sbr.rel (0) target = $region13
    $region12: #{tpu_custom_call.1} parent=1 // pred_region
      _
    $region13: #{tpu_custom_call.1} parent=1 // pred_fallthru
      _
    // Predicated region
    $region14: #{tpu_custom_call.1} parent=1 // pred_check
      _
    $region15: #{tpu_custom_call.1} parent=1 // pred_check_branch
      %25 = sbr.rel (0) target = $region17
    $region16: #{tpu_custom_call.1} parent=1 // pred_region
      %26 = dma.done [#allocation3], 128
    $region17: #{tpu_custom_call.1} parent=1 // pred_fallthru
      _
    %v27 = vld [vmem:[#allocation2] sm:$0xff]
    %v28 = vld [vmem:[%s1] sm:$0x1]
    %v30 = vlaneseq
    %v31 = vshrl.u32 %v30, 7
    %v32 = vsub.s32 0, %v31
    %v33 = vrot.slane %v28, %v32
    %v35 = vmul.f32 %v27, %v33
    %v36 = vld [vmem:[%s2] sm:$0x1]
    %v38 = vlaneseq
    %v39 = vshrl.u32 %v38, 7
    %v40 = vsub.s32 0, %v39
    %v41 = vrot.slane %v36, %v40
    %v43 = vadd.f32 %v35, %v41
    %v44 = vand.u32 2147483647, %v43
    %vm45 = vcmp.le.f32.partialorder %v44, 0.7853982
    %vm46 = vcmp.lt.s32.totalorder %v43, 0
    %v47 = vand.u32 %v43, 2139095040
    %v48 = vshrl.u32 %v47, 23
    %v49 = vsub.s32 %v48, 127
    %v50 = vand.u32 2147483647, %v43
    %v51 = vand.u32 %v50, 8388607
    %v52 = vor.u32 %v51, 8388608
    %v53 = vsub.s32 0, %v52
    %v54 = vadd.s32 %v49, 1
    %vm55 = vcmp.gt.s32.totalorder %v54, 0
    %v56 = vsel %vm55, %v54, 0
    %v57 = vshrl.u32 %v56, 5
    %v58 = vand.u32 %v56, 31
    %v59 = vsub.s32 32, %v58
    %v60 = vshrl.u32 683565275, %v59
    %v61 = vshll.u32 683565275, %v58
    %v62 = vshrl.u32 2475754826, %v59
    %v63 = vor.u32 %v61, %v62
    %v64 = vshll.u32 2475754826, %v58
    %v65 = vshrl.u32 2131351028, %v59
    %v66 = vor.u32 %v64, %v65
    %v67 = vshll.u32 2131351028, %v58
    %v68 = vshrl.u32 2102212464, %v59
    %v69 = vor.u32 %v67, %v68
    %v70 = vshll.u32 2102212464, %v58
    %v71 = vshrl.u32 920167782, %v59
    %v72 = vor.u32 %v70, %v71
    %v73 = vshll.u32 920167782, %v58
    %v74 = vshrl.u32 1326507024, %v59
    %v75 = vor.u32 %v73, %v74
    %vm76 = vcmp.lt.s32.totalorder %v57, 1
    %vm77 = vcmp.lt.s32.totalorder %v57, 2
    %vm78 = vcmp.lt.s32.totalorder %v57, 3
    %vm79 = vcmp.lt.s32.totalorder %v57, 4
    %v80 = vsel %vm76, %v60, %v63
    %v81 = vsel %vm79, %v69, 2102212464
    %v82 = vsel %vm78, %v66, %v81
    %v83 = vsel %vm77, %v80, %v82
    %v84 = vsel %vm76, %v63, %v66
    %v85 = vsel %vm79, %v72, 920167782
    %v86 = vsel %vm78, %v69, %v85
    %v87 = vsel %vm77, %v84, %v86
    %v88 = vsel %vm76, %v66, %v69
    %v89 = vsel %vm79, %v75, 1326507024
    %v90 = vsel %vm78, %v72, %v89
    %v91 = vsel %vm77, %v88, %v90
    %v92 = vshll.u32 %v52, 8
    %v93 = vmul.u32.u64.compose %v92, %v91
    %v94 = vextract.low.u32 %v93
    %v95 = vextract.high.u32 %v93
    %v96 = vmul.u32.u64.compose %v92, %v87
    %v97 = vextract.low.u32 %v96
    %v98 = vextract.high.u32 %v96
    %v99 = vmul.u32 %v92, %v83
    %v100 = vadd.s32 %v95, %v97
    %vm101 = vc.u32 %v95, %v97
    %v102 = vadd.s32 %v98, 1
    %v103 = vsel %vm101, %v102, %v98
    %v104 = vadd.s32 %v99, %v103
    %v105 = vadd.s32 %v104, 536870912
    %v106 = vshrl.u32 %v105, 30
    %v107 = vshll.u32 %v106, 30
    %v108 = vsub.s32 %v104, %v107
    %vm109 = vcmp.lt.s32.totalorder %v108, 0
    %v110 = vsub.s32 0, %v108
    %v111 = vsel %vm109, %v110, %v108
    %v112 = vclz %v111
    %v113 = vsub.s32 %v112, 2
    %vm114 = vcmp.gt.s32.totalorder 0, %v113
    %v115 = vsel %vm114, 0, %v113
    %v116 = vsub.s32 32, %v115
    %v117 = vshll.u32 %v108, %v115
    %v118 = vshrl.u32 %v100, %v116
    %v119 = vor.u32 %v117, %v118
    %v120 = vsub.s32 4294967266, %v115
    %v121 = vadd.s32 %v120, 127
    %v122 = vshll.u32 %v121, 23
    %v123 = vor.u32 4788187, %v122
    %v124 = vand.u32 2147483647, %v123
    %v126 = vcvt.s32.f32 %v119
    %v127 = vmul.f32 %v126, %v124
    %v128 = vxor.u32 %v127, 2147483648
    %v129 = vsel %vm46, %v128, %v127
    %v130 = vsub.s32 4, %v106
    %v131 = vsel %vm46, %v130, %v106
    %v132 = vsel %vm45, %v43, %v129
    %v133 = vsel %vm45, 0, %v131
    %v134 = vcosq.f32.pop %v132
    %v135 = vsinq.f32.pop %v132
    %vm136 = vweird.f32 %v43
    %v137 = vadd.s32 %v133, 3
    %v138 = vand.u32 %v137, 3
    %vm139 = vcmp.lt.s32.totalorder %v138, 2
    %vm140 = vcmp.eq.s32.totalorder %v138, 0
    %v141 = vxor.u32 %v135, 2147483648
    %v142 = vsel %vm140, %v134, %v141
    %vm143 = vcmp.eq.s32.totalorder %v138, 2
    %v144 = vxor.u32 %v134, 2147483648
    %v145 = vsel %vm143, %v144, %v135
    %v146 = vsel %vm139, %v142, %v145
    %v147 = vsel %vm136, nan, %v146
    %148 = vst [vmem:[#allocation5] sm:$0xff] %v147
    // Predicated region
    $region18: #{tpu_custom_call.1} parent=1 // pred_check
      _
    $region19: #{tpu_custom_call.1} parent=1 // pred_check_branch
      %150 = sbr.rel (0) target = $region21
    $region20: #{tpu_custom_call.1} parent=1 // pred_region
      %s152 = ssub.s32 128, 128
      %153 = vsyncadd [#allocation4], %s152
      %s155 = sshll.u32 [#allocation5], 4
      %s156 = int_to_ptr.vmem [resolvable:$true] %s155
      %158 = dma.vmem_to_hbm [thread:$0]  %s156, 128, %s3, [#allocation4]
    $region21: #{tpu_custom_call.1} parent=1 // pred_fallthru
      _
    // Predicated region
    $region22: #{tpu_custom_call.1} parent=1 // pred_check
      _
    $region23: #{tpu_custom_call.1} parent=1 // pred_check_branch
      %160 = sbr.rel (0) target = $region25
    $region24: #{tpu_custom_call.1} parent=1 // pred_region
      %161 = dma.done [#allocation4], 128
    $region25: #{tpu_custom_call.1} parent=1 // pred_fallthru
      _
    %162 = vsyncpa [#allocation3], 1
    %163 = vsyncpa [#allocation4], 1

</llo_original>
